<compile_context>
chip_gen: v7x
topology: tpu7x:2x2x1
jax: 0.10.0
libtpu: 0.0.40
codegen_flags: <defaults>
</compile_context>

<pallas_src>
import math
import functools

import jax
import jax.numpy as jnp
from jax.experimental import pallas as pl
from jax.experimental.pallas import tpu as pltpu


SUBLANE = 8            # TPU sublane width (node-dim tile granularity)
TILE_N_TARGET = 2048   # rows per grid step; ~1 MiB x-tile (f32) + tiny weights,
                       # comfortably inside default scoped VMEM on v5e/v6e/v7x.


def _round_up(v, m):
    return ((v + m - 1) // m) * m


def _fused_mlp_kernel(x_ref, *refs, residual_flags, relu_flags, compute_dtype):
    """One node-tile through the whole layer stack.

    refs = (w_ref_0, ..., w_ref_{L-1}, o_ref).  Weights are VMEM-resident
    (constant index_map); the running activation `h` stays on-chip between
    layers.  MXU matmuls accumulate in f32; residual add + ReLU run in f32 on
    the VPU.  Residual widths always match because dims are unpadded and the
    PyTorch module only adds the residual when in_features == out_features.
    """
    w_refs = refs[:-1]
    o_ref = refs[-1]

    h = x_ref[...]
    for w_ref, residual, relu in zip(w_refs, residual_flags, relu_flags):
        out = jnp.dot(
            h.astype(compute_dtype),
            w_ref[...],
            preferred_element_type=jnp.float32,
        )
        if residual:
            out = out + h.astype(jnp.float32)
        if relu:
            out = jnp.maximum(out, 0.0)
        h = out  # f32 value, stays in VMEM/vregs between layers
    o_ref[...] = h.astype(o_ref.dtype)


def gnn_agp_forward(x, weights, *, compute_dtype=jnp.float32, out_dtype=None,
                    tile_n_target=TILE_N_TARGET):
    """GnnAGP.forward (inference: dropout == identity) as one fused Pallas call.

    x: [N, nfeat].  weights[i]: [din_i, dout_i].
    compute_dtype: dtype fed to the MXU.  bfloat16 is recommended on ALL TPU
      generations (v5e/v6e/v7x MXUs are bf16-native) -- it halves x/weight HBM
      read traffic; accumulation / residual / ReLU stay float32.
      Note: with bf16 operands the layer-0 residual adds a bf16-rounded copy of
      x (negligible vs the bf16 matmul error itself).
    out_dtype: output dtype (default: x.dtype).  bf16 halves the writeback when
      downstream consumers accept bf16 logits.
    """
    n, nfeat = x.shape
    dims = [(int(w.shape[0]), int(w.shape[1])) for w in weights]
    assert dims[0][0] == nfeat, (dims[0], nfeat)
    for li in range(1, len(dims)):
        assert dims[li][0] == dims[li - 1][1], (
            f"weight chain mismatch at layer {li}: {dims[li - 1]} -> {dims[li]}")

    nlayers = len(weights)
    nclass = dims[-1][1]
    # Residual gating exactly as in the PyTorch Dense module (in == out).
    residual_flags = tuple(din == dout for din, dout in dims)
    relu_flags = tuple([True] * (nlayers - 1) + [False])

    # Node-axis tiling (the only padded axis).
    if n <= tile_n_target:
        tile_n = _round_up(n, SUBLANE)
    else:
        tile_n = tile_n_target
    n_pad = _round_up(n, tile_n)
    grid = (n_pad // tile_n,)

    x_p = x if n_pad == n else jnp.pad(x, ((0, n_pad - n), (0, 0)))
    x_p = x_p.astype(compute_dtype)
    ws = [w.astype(compute_dtype) for w in weights]

    if out_dtype is None:
        out_dtype = x.dtype

    # Feature dims are left unpadded: a block covering the full last dim is
    # legal, and intermediates never hit HBM so lane padding buys nothing on a
    # memory-bound kernel (per review: don't pad hidden/class dims for the MXU).
    in_specs = [pl.BlockSpec((tile_n, nfeat), lambda i: (i, 0))]
    for w in ws:
        din, dout = w.shape
        # Constant index map -> weight block loaded once, stays VMEM-resident.
        in_specs.append(pl.BlockSpec((din, dout), lambda i: (0, 0)))
    out_spec = pl.BlockSpec((tile_n, nclass), lambda i: (i, 0))

    # Cost estimate on *unpadded* bytes (keeps XLA scheduling honest).
    itemsize_in = jnp.dtype(compute_dtype).itemsize
    itemsize_out = jnp.dtype(out_dtype).itemsize
    flops = 2 * n_pad * sum(din * dout for din, dout in dims)
    bytes_accessed = (
        x_p.size * itemsize_in
        + sum(w.size for w in ws) * itemsize_in
        + n_pad * nclass * itemsize_out
    )

    kernel = functools.partial(
        _fused_mlp_kernel,
        residual_flags=residual_flags,
        relu_flags=relu_flags,
        compute_dtype=compute_dtype,
    )

    out_padded = pl.pallas_call(
        kernel,
        out_shape=jax.ShapeDtypeStruct((n_pad, nclass), out_dtype),
        grid=grid,
        in_specs=in_specs,
        out_specs=out_spec,
        compiler_params=pltpu.CompilerParams(
            # Node tiles are independent -> shardable across v7x's 2 TCs.
            dimension_semantics=("parallel",),
        ),
        cost_estimate=pl.CostEstimate(
            flops=flops, transcendentals=0, bytes_accessed=bytes_accessed
        ),
    )(x_p, *ws)

    return out_padded[:n]


def init_gnn_agp_params(key, nfeat, nlayers, nhidden, nclass):
    """Deterministic init matching Dense.reset_parameters:
    weight ~ U(-1/sqrt(out_features), 1/sqrt(out_features)), shape (in, out)."""
    dims = [(nfeat, nhidden)]
    for _ in range(nlayers - 2):
        dims.append((nhidden, nhidden))
    dims.append((nhidden, nclass))
    weights = []
    for din, dout in dims:
        key, sub = jax.random.split(key)
        stdv = 1.0 / math.sqrt(dout)
        weights.append(
            jax.random.uniform(sub, (din, dout), jnp.float32, minval=-stdv, maxval=stdv)
        )
    return weights


def gnn_agp_forward_ref(x, weights):
    """Pure-JAX reference for correctness check."""
    h = x
    for li, w in enumerate(weights):
        o = h @ w
        if w.shape[0] == w.shape[1]:
            o = o + h
        if li != len(weights) - 1:
            o = jnp.maximum(o, 0.0)
        h = o
    return h


if __name__ == "__main__":
    # Small, module-consistent shapes: N nodes with nfeat features.
    N_NODES = 128
    NFEAT = 64
    NLAYERS = 4      # -> fcs: [64->32, 32->32, 32->32, 32->8]
    NHIDDEN = 32
    NCLASS = 8

    key = jax.random.PRNGKey(0)
    key_x, key_w = jax.random.split(key)
    x = jax.random.normal(key_x, (N_NODES, NFEAT), dtype=jnp.float32)
    weights = init_gnn_agp_params(key_w, NFEAT, NLAYERS, NHIDDEN, NCLASS)

    ref = gnn_agp_forward_ref(x, weights)

    # f32 operand path (exact-ish; tight tolerance).
    out = jax.block_until_ready(gnn_agp_forward(x, weights))
    assert out.shape == (N_NODES, NCLASS), out.shape
    assert jnp.allclose(out, ref, atol=1e-5, rtol=1e-5), "f32 path mismatch vs reference"

    # bf16 operand path (recommended on v5e/v6e/v7x: halves x/weight HBM reads);
    # accumulation + epilogue stay f32, so tolerance is loosened only modestly.
    out_bf16 = jax.block_until_ready(
        gnn_agp_forward(x, weights, compute_dtype=jnp.bfloat16)
    )
    assert out_bf16.shape == (N_NODES, NCLASS), out_bf16.shape
    assert jnp.allclose(out_bf16, ref, atol=1e-1, rtol=1e-1), "bf16 path mismatch vs reference"

    # Non-multiple-of-tile node count + residual-at-layer-0 case (nfeat == nhidden),
    # exercising the row-padding path and the unpadded-x residual.
    x2 = jax.random.normal(key_x, (77, NHIDDEN), dtype=jnp.float32)
    weights2 = init_gnn_agp_params(key_w, NHIDDEN, NLAYERS, NHIDDEN, NCLASS)
    ref2 = gnn_agp_forward_ref(x2, weights2)
    out2 = jax.block_until_ready(gnn_agp_forward(x2, weights2))
    assert out2.shape == (77, NCLASS), out2.shape
    assert jnp.allclose(out2, ref2, atol=1e-5, rtol=1e-5), "residual/pad path mismatch"

    print("KERNEL_OK")
</pallas_src>

<mosaic_0001>
module attributes {stable_mosaic.version = 11 : i64} {
  func.func @_fused_mlp_kernel(%arg0: i32, %arg1: memref<128x64xf32, #tpu.memory_space<vmem>>, %arg2: memref<64x32xf32, #tpu.memory_space<vmem>>, %arg3: memref<32x32xf32, #tpu.memory_space<vmem>>, %arg4: memref<32x32xf32, #tpu.memory_space<vmem>>, %arg5: memref<32x8xf32, #tpu.memory_space<vmem>>, %arg6: memref<128x8xf32, #tpu.memory_space<vmem>>) attributes {dimension_semantics = [#tpu.dimension_semantics<parallel>], iteration_bounds = array<i64: 1>, scalar_prefetch = 0 : i64, scratch_operands = 0 : i64, tpu.core_type = #tpu.core_type<tc>, window_params = [{transform_indices = @transform_0, window_bounds = array<i64: 128, 64>}, {pipeline_mode = #tpu.pipeline_mode<synchronous>, transform_indices = @transform_1, window_bounds = array<i64: 64, 32>}, {pipeline_mode = #tpu.pipeline_mode<synchronous>, transform_indices = @transform_2, window_bounds = array<i64: 32, 32>}, {pipeline_mode = #tpu.pipeline_mode<synchronous>, transform_indices = @transform_3, window_bounds = array<i64: 32, 32>}, {pipeline_mode = #tpu.pipeline_mode<synchronous>, transform_indices = @transform_4, window_bounds = array<i64: 32, 8>}, {transform_indices = @transform_5, window_bounds = array<i64: 128, 8>}]} {
    %c0 = arith.constant 0 : index
    %c0_0 = arith.constant 0 : index
    %0 = vector.load %arg1[%c0, %c0_0] : memref<128x64xf32, #tpu.memory_space<vmem>>, vector<128x64xf32>
    %c0_1 = arith.constant 0 : index
    %c0_2 = arith.constant 0 : index
    %1 = vector.load %arg2[%c0_1, %c0_2] : memref<64x32xf32, #tpu.memory_space<vmem>>, vector<64x32xf32>
    %cst = arith.constant dense<0.000000e+00> : vector<128x32xf32>
    %2 = tpu.matmul %0, %1, %cst {dimension_numbers = #tpu.dot_dimension_numbers<[1], [0], [0], [1], [0, 0, 1, 1], [], []>} : vector<128x64xf32>, vector<64x32xf32>, vector<128x32xf32> -> vector<128x32xf32>
    %cst_3 = arith.constant 0.000000e+00 : f32
    %3 = vector.broadcast %cst_3 : f32 to vector<128x32xf32>
    %4 = arith.maximumf %2, %3 : vector<128x32xf32>
    %c0_4 = arith.constant 0 : index
    %c0_5 = arith.constant 0 : index
    %5 = vector.load %arg3[%c0_4, %c0_5] : memref<32x32xf32, #tpu.memory_space<vmem>>, vector<32x32xf32>
    %cst_6 = arith.constant dense<0.000000e+00> : vector<128x32xf32>
    %6 = tpu.matmul %4, %5, %cst_6 {dimension_numbers = #tpu.dot_dimension_numbers<[1], [0], [0], [1], [0, 0, 1, 1], [], []>} : vector<128x32xf32>, vector<32x32xf32>, vector<128x32xf32> -> vector<128x32xf32>
    %7 = arith.addf %6, %4 : vector<128x32xf32>
    %cst_7 = arith.constant 0.000000e+00 : f32
    %8 = vector.broadcast %cst_7 : f32 to vector<128x32xf32>
    %9 = arith.maximumf %7, %8 : vector<128x32xf32>
    %c0_8 = arith.constant 0 : index
    %c0_9 = arith.constant 0 : index
    %10 = vector.load %arg4[%c0_8, %c0_9] : memref<32x32xf32, #tpu.memory_space<vmem>>, vector<32x32xf32>
    %cst_10 = arith.constant dense<0.000000e+00> : vector<128x32xf32>
    %11 = tpu.matmul %9, %10, %cst_10 {dimension_numbers = #tpu.dot_dimension_numbers<[1], [0], [0], [1], [0, 0, 1, 1], [], []>} : vector<128x32xf32>, vector<32x32xf32>, vector<128x32xf32> -> vector<128x32xf32>
    %12 = arith.addf %11, %9 : vector<128x32xf32>
    %cst_11 = arith.constant 0.000000e+00 : f32
    %13 = vector.broadcast %cst_11 : f32 to vector<128x32xf32>
    %14 = arith.maximumf %12, %13 : vector<128x32xf32>
    %c0_12 = arith.constant 0 : index
    %c0_13 = arith.constant 0 : index
    %15 = vector.load %arg5[%c0_12, %c0_13] : memref<32x8xf32, #tpu.memory_space<vmem>>, vector<32x8xf32>
    %cst_14 = arith.constant dense<0.000000e+00> : vector<128x8xf32>
    %16 = tpu.matmul %14, %15, %cst_14 {dimension_numbers = #tpu.dot_dimension_numbers<[1], [0], [0], [1], [0, 0, 1, 1], [], []>} : vector<128x32xf32>, vector<32x8xf32>, vector<128x8xf32> -> vector<128x8xf32>
    %c0_15 = arith.constant 0 : index
    %c0_16 = arith.constant 0 : index
    %17 = vector.load %arg6[%c0_15, %c0_16] : memref<128x8xf32, #tpu.memory_space<vmem>>, vector<128x8xf32>
    tpu.vector_store %arg6[%c0_15, %c0_16], %16 {strides = array<i32>} : memref<128x8xf32, #tpu.memory_space<vmem>>, vector<128x8xf32>,
    return
  }
  func.func @transform_0(%arg0: i32) -> (i32, i32) {
    %c0_i32 = arith.constant 0 : i32
    %c0_i32_0 = arith.constant 0 : i32
    return %arg0, %c0_i32 : i32, i32
  }
  func.func @transform_1(%arg0: i32) -> (i32, i32) {
    %c0_i32 = arith.constant 0 : i32
    %c0_i32_0 = arith.constant 0 : i32
    %c0_i32_1 = arith.constant 0 : i32
    return %c0_i32, %c0_i32_0 : i32, i32
  }
  func.func @transform_2(%arg0: i32) -> (i32, i32) {
    %c0_i32 = arith.constant 0 : i32
    %c0_i32_0 = arith.constant 0 : i32
    %c0_i32_1 = arith.constant 0 : i32
    return %c0_i32, %c0_i32_0 : i32, i32
  }
  func.func @transform_3(%arg0: i32) -> (i32, i32) {
    %c0_i32 = arith.constant 0 : i32
    %c0_i32_0 = arith.constant 0 : i32
    %c0_i32_1 = arith.constant 0 : i32
    return %c0_i32, %c0_i32_0 : i32, i32
  }
  func.func @transform_4(%arg0: i32) -> (i32, i32) {
    %c0_i32 = arith.constant 0 : i32
    %c0_i32_0 = arith.constant 0 : i32
    %c0_i32_1 = arith.constant 0 : i32
    return %c0_i32, %c0_i32_0 : i32, i32
  }
  func.func @transform_5(%arg0: i32) -> (i32, i32) {
    %c0_i32 = arith.constant 0 : i32
    %c0_i32_0 = arith.constant 0 : i32
    return %arg0, %c0_i32 : i32, i32
  }
}

</mosaic_0001>

<llo_original>
// kernel: tpu_custom_call.1
$region0: #{tpu_custom_call.1}
  #allocation0 [shape = 'u32[]', space=smem, size = 0x4, offset = 0x4, fixed_abs, tag = 'smem constant byte address 0x4 - core index']
  #allocation1 [shape = 'u32[144,128]{1,0:T(1,128)}', space=vmem, size = 0x12000, scoped, tag = 'internal scratch']
  %s0 = inlined_call_operand.vmem [shape: f32[128,64], index: 0, kind: input, shape index: {}]
  %s1 = inlined_call_operand.vmem [shape: f32[64,32], index: 1, kind: input, shape index: {}]
  %s2 = inlined_call_operand.vmem [shape: f32[32,32], index: 2, kind: input, shape index: {}]
  %s3 = inlined_call_operand.vmem [shape: f32[32,32], index: 3, kind: input, shape index: {}]
  %s4 = inlined_call_operand.vmem [shape: f32[32,8], index: 4, kind: input, shape index: {}]
  %s5 = inlined_call_operand.vmem [shape: f32[128,8], index: 5, kind: output, shape index: {}]
  %s6 = sld [smem:[#allocation0]]
  $region30: #{tpu_custom_call.1} parent=0
    _
  %s8 = ssub.s32 1, %s6
  %s9 = scalar_select 0, %s8, %s6
  // Predicated region
  $region2: #{tpu_custom_call.1} parent=0 // pred_check
    _
  $region3: #{tpu_custom_call.1} parent=0 // pred_check_branch
    %11 = sbr.rel (0) target = $region5
  $region4: #{tpu_custom_call.1} parent=0 // pred_region
    _
  $region5: #{tpu_custom_call.1} parent=0 // pred_fallthru
    _
  // Predicated region
  $region6: #{tpu_custom_call.1} parent=0 // pred_check
    _
  $region7: #{tpu_custom_call.1} parent=0 // pred_check_branch
    %13 = sbr.rel (0) target = $region9
  $region8: #{tpu_custom_call.1} parent=0 // pred_region
    _
  $region9: #{tpu_custom_call.1} parent=0 // pred_fallthru
    _
  // Predicated region
  $region10: #{tpu_custom_call.1} parent=0 // pred_check
    _
  $region11: #{tpu_custom_call.1} parent=0 // pred_check_branch
    %15 = sbr.rel (0) target = $region13
  $region12: #{tpu_custom_call.1} parent=0 // pred_region
    _
  $region13: #{tpu_custom_call.1} parent=0 // pred_fallthru
    _
  // Predicated region
  $region14: #{tpu_custom_call.1} parent=0 // pred_check
    _
  $region15: #{tpu_custom_call.1} parent=0 // pred_check_branch
    %17 = sbr.rel (0) target = $region17
  $region16: #{tpu_custom_call.1} parent=0 // pred_region
    _
  $region17: #{tpu_custom_call.1} parent=0 // pred_fallthru
    _
  // Predicated region
  $region18: #{tpu_custom_call.1} parent=0 // pred_check
    _
  $region19: #{tpu_custom_call.1} parent=0 // pred_check_branch
    %19 = sbr.rel (0) target = $region21
  $region20: #{tpu_custom_call.1} parent=0 // pred_region
    _
  $region21: #{tpu_custom_call.1} parent=0 // pred_fallthru
    _
  %v20 = vld [vmem:[%s0] sm:$0xff]
  %v21 = vld [vmem:[%s0 + $0x8] sm:$0xff]
  %v22 = vld [vmem:[%s0 + $0x10] sm:$0xff]
  %v23 = vld [vmem:[%s0 + $0x18] sm:$0xff]
  %v24 = vld [vmem:[%s0 + $0x20] sm:$0xff]
  %v25 = vld [vmem:[%s0 + $0x28] sm:$0xff]
  %v26 = vld [vmem:[%s0 + $0x30] sm:$0xff]
  %v27 = vld [vmem:[%s0 + $0x38] sm:$0xff]
  %v28 = vld [vmem:[%s0 + $0x40] sm:$0xff]
  %v29 = vld [vmem:[%s0 + $0x48] sm:$0xff]
  %v30 = vld [vmem:[%s0 + $0x50] sm:$0xff]
  %v31 = vld [vmem:[%s0 + $0x58] sm:$0xff]
  %v32 = vld [vmem:[%s0 + $0x60] sm:$0xff]
  %v33 = vld [vmem:[%s0 + $0x68] sm:$0xff]
  %v34 = vld [vmem:[%s0 + $0x70] sm:$0xff]
  %v35 = vld [vmem:[%s0 + $0x78] sm:$0xff]
  %v36 = vld [vmem:[%s1] sm:$0xff]
  %v37 = vld [vmem:[%s1 + $0x8] sm:$0xff]
  %v38 = vld [vmem:[%s1 + $0x10] sm:$0xff]
  %v39 = vld [vmem:[%s1 + $0x18] sm:$0xff]
  %v40 = vld [vmem:[%s1 + $0x20] sm:$0xff]
  %v41 = vld [vmem:[%s1 + $0x28] sm:$0xff]
  %v42 = vld [vmem:[%s1 + $0x30] sm:$0xff]
  %v43 = vld [vmem:[%s1 + $0x38] sm:$0xff]
  %vm44 = vcmask 523264
  %v46 = vsel %vm44, %v20, 0
  %v49 = vsel %vm44, %v21, 0
  %v52 = vsel %vm44, %v22, 0
  %v55 = vsel %vm44, %v23, 0
  %v58 = vsel %vm44, %v24, 0
  %v61 = vsel %vm44, %v25, 0
  %v64 = vsel %vm44, %v26, 0
  %v67 = vsel %vm44, %v27, 0
  %v70 = vsel %vm44, %v28, 0
  %v73 = vsel %vm44, %v29, 0
  %v76 = vsel %vm44, %v30, 0
  %v79 = vsel %vm44, %v31, 0
  %v82 = vsel %vm44, %v32, 0
  %v85 = vsel %vm44, %v33, 0
  %v88 = vsel %vm44, %v34, 0
  %v91 = vsel %vm44, %v35, 0
  %93 = vmatprep.subr.mxu0 0.0
  %94 = vmatpush1.msra.mxu0 %v36
  %95 = vmatprep.subr.mxu0 0.0
  %96 = vmatpush1.msra.mxu0 %v37
  %97 = vmatprep.subr.mxu0 0.0
  %98 = vmatpush1.msra.mxu0 %v38
  %99 = vmatprep.subr.mxu0 0.0
  %100 = vmatpush1.msra.mxu0 %v39
  %101 = vmatprep.subr.mxu0 0.0
  %102 = vmatpush1.msra.mxu0 %v40
  %103 = vmatprep.subr.mxu0 0.0
  %104 = vmatpush1.msra.mxu0 %v41
  %105 = vmatprep.subr.mxu0 0.0
  %106 = vmatpush1.msra.mxu0 %v42
  %107 = vmatprep.subr.mxu0 0.0
  %108 = vmatpush1.msra.mxu0 %v43
  %109 = vmatprep.subr.mxu0 0.0
  %110 = vmatpush1.msra.mxu0 0.0
  %111 = vmatprep.subr.mxu0 0.0
  %112 = vmatpush1.msra.mxu0 0.0
  %113 = vmatprep.subr.mxu0 0.0
  %114 = vmatpush1.msra.mxu0 0.0
  %115 = vmatprep.subr.mxu0 0.0
  %116 = vmatpush1.msra.mxu0 0.0
  %117 = vmatprep.subr.mxu0 0.0
  %118 = vmatpush1.msra.mxu0 0.0
  %119 = vmatprep.subr.mxu0 0.0
  %120 = vmatpush1.msra.mxu0 0.0
  %121 = vmatprep.subr.mxu0 0.0
  %122 = vmatpush1.msra.mxu0 0.0
  %123 = vmatprep.subr.mxu0 0.0
  %124 = vmatpush1.msra.mxu0 0.0
  %125 = vmatprep.subr.mxu0 0.0
  %126 = vmatpush1.msra.mxu0 0.0
  %127 = vmatprep.subr.mxu0 0.0
  %128 = vmatpush1.msra.mxu0 0.0
  %129 = vmatprep.subr.mxu0 0.0
  %130 = vmatpush1.msra.mxu0 0.0
  %131 = vmatprep.subr.mxu0 0.0
  %132 = vmatpush1.msra.mxu0 0.0
  %133 = vmatprep.subr.mxu0 0.0
  %134 = vmatpush1.msra.mxu0 0.0
  %135 = vmatprep.subr.mxu0 0.0
  %136 = vmatpush1.msra.mxu0 0.0
  %137 = vmatprep.subr.mxu0 0.0
  %138 = vmatpush1.msra.mxu0 0.0
  %139 = vmatprep.subr.mxu0 0.0
  %140 = vmatpush1.msra.mxu0 0.0
  %141 = vmatprep.subr.mxu0 0.0
  %142 = vmatpush1.msra.mxu0 0.0
  %143 = vmatprep.subr.mxu0 0.0
  %144 = vmatpush1.msra.mxu0 0.0
  %145 = vmatprep.subr.mxu0 0.0
  %146 = vmatpush1.msra.mxu0 0.0
  %147 = vmatprep.subr.mxu0 0.0
  %148 = vmatpush1.msra.mxu0 0.0
  %149 = vmatprep.subr.mxu0 0.0
  %150 = vmatpush1.msra.mxu0 0.0
  %151 = vmatprep.subr.mxu0 0.0
  %152 = vmatpush1.msra.mxu0 0.0
  %153 = vmatprep.subr.mxu0 0.0
  %154 = vmatpush1.msra.mxu0 0.0
  %155 = vmatprep.subr.mxu0 0.0
  %156 = vmatpush1.msra.mxu0 0.0
  %157 = vmatprep.mubr.f32.mxu0 0.0
  %158 = vmatmul.mubr.f32.gmra.mrb[0].mxu0 %v46
  %v159 = vpop.f32.mrb[0].mxu0
  %v160 = vadd.f32 0.0, %v159
  %v161 = vpop.f32.mrb[0].mxu0
  %162 = vmatprep.mubr.f32.mxu0 0.0
  %163 = vmatmul.mubr.f32.gmra.mrb[0].mxu0 %v49
  %v164 = vpop.f32.mrb[0].mxu0
  %v165 = vadd.f32 0.0, %v164
  %v166 = vpop.f32.mrb[0].mxu0
  %167 = vmatprep.mubr.f32.mxu0 0.0
  %168 = vmatmul.mubr.f32.gmra.mrb[0].mxu0 %v52
  %v169 = vpop.f32.mrb[0].mxu0
  %v170 = vadd.f32 0.0, %v169
  %v171 = vpop.f32.mrb[0].mxu0
  %172 = vmatprep.mubr.f32.mxu0 0.0
  %173 = vmatmul.mubr.f32.gmra.mrb[0].mxu0 %v55
  %v174 = vpop.f32.mrb[0].mxu0
  %v175 = vadd.f32 0.0, %v174
  %v176 = vpop.f32.mrb[0].mxu0
  %177 = vmatprep.mubr.f32.mxu0 0.0
  %178 = vmatmul.mubr.f32.gmra.mrb[0].mxu0 %v58
  %v179 = vpop.f32.mrb[0].mxu0
  %v180 = vadd.f32 0.0, %v179
  %v181 = vpop.f32.mrb[0].mxu0
  %182 = vmatprep.mubr.f32.mxu0 0.0
  %183 = vmatmul.mubr.f32.gmra.mrb[0].mxu0 %v61
  %v184 = vpop.f32.mrb[0].mxu0
  %v185 = vadd.f32 0.0, %v184
  %v186 = vpop.f32.mrb[0].mxu0
  %187 = vmatprep.mubr.f32.mxu0 0.0
  %188 = vmatmul.mubr.f32.gmra.mrb[0].mxu0 %v64
  %v189 = vpop.f32.mrb[0].mxu0
  %v190 = vadd.f32 0.0, %v189
  %v191 = vpop.f32.mrb[0].mxu0
  %192 = vmatprep.mubr.f32.mxu0 0.0
  %193 = vmatmul.mubr.f32.gmra.mrb[0].mxu0 %v67
  %v194 = vpop.f32.mrb[0].mxu0
  %v195 = vadd.f32 0.0, %v194
  %v196 = vpop.f32.mrb[0].mxu0
  %197 = vmatprep.mubr.f32.mxu0 0.0
  %198 = vmatmul.mubr.f32.gmra.mrb[0].mxu0 %v70
  %v199 = vpop.f32.mrb[0].mxu0
  %v200 = vadd.f32 0.0, %v199
  %v201 = vpop.f32.mrb[0].mxu0
  %202 = vmatprep.mubr.f32.mxu0 0.0
  %203 = vmatmul.mubr.f32.gmra.mrb[0].mxu0 %v73
  %v204 = vpop.f32.mrb[0].mxu0
  %v205 = vadd.f32 0.0, %v204
  %v206 = vpop.f32.mrb[0].mxu0
  %207 = vmatprep.mubr.f32.mxu0 0.0
  %208 = vmatmul.mubr.f32.gmra.mrb[0].mxu0 %v76
  %v209 = vpop.f32.mrb[0].mxu0
  %v210 = vadd.f32 0.0, %v209
  %v211 = vpop.f32.mrb[0].mxu0
  %212 = vmatprep.mubr.f32.mxu0 0.0
  %213 = vmatmul.mubr.f32.gmra.mrb[0].mxu0 %v79
  %v214 = vpop.f32.mrb[0].mxu0
  %v215 = vadd.f32 0.0, %v214
  %v216 = vpop.f32.mrb[0].mxu0
  %217 = vmatprep.mubr.f32.mxu0 0.0
  %218 = vmatmul.mubr.f32.gmra.mrb[0].mxu0 %v82
  %v219 = vpop.f32.mrb[0].mxu0
  %v220 = vadd.f32 0.0, %v219
  %v221 = vpop.f32.mrb[0].mxu0
  %222 = vmatprep.mubr.f32.mxu0 0.0
  %223 = vmatmul.mubr.f32.gmra.mrb[0].mxu0 %v85
  %v224 = vpop.f32.mrb[0].mxu0
  %v225 = vadd.f32 0.0, %v224
  %v226 = vpop.f32.mrb[0].mxu0
  %227 = vmatprep.mubr.f32.mxu0 0.0
  %228 = vmatmul.mubr.f32.gmra.mrb[0].mxu0 %v88
  %v229 = vpop.f32.mrb[0].mxu0
  %v230 = vadd.f32 0.0, %v229
  %v231 = vpop.f32.mrb[0].mxu0
  %232 = vmatprep.mubr.f32.mxu0 0.0
  %233 = vmatmul.mubr.f32.gmra.mrb[0].mxu0 %v91
  %v234 = vpop.f32.mrb[0].mxu0
  %v235 = vadd.f32 0.0, %v234
  %v236 = vpop.f32.mrb[0].mxu0
  %237 = vdwg.mxu0
  %v238 = vmax.f32 %v160, 0.0
  %v239 = vmax.f32 %v165, 0.0
  %v240 = vmax.f32 %v170, 0.0
  %v241 = vmax.f32 %v175, 0.0
  %v242 = vmax.f32 %v180, 0.0
  %v243 = vmax.f32 %v185, 0.0
  %v244 = vmax.f32 %v190, 0.0
  %v245 = vmax.f32 %v195, 0.0
  %v246 = vmax.f32 %v200, 0.0
  %v247 = vmax.f32 %v205, 0.0
  %v248 = vmax.f32 %v210, 0.0
  %v249 = vmax.f32 %v215, 0.0
  %v250 = vmax.f32 %v220, 0.0
  %v251 = vmax.f32 %v225, 0.0
  %v252 = vmax.f32 %v230, 0.0
  %v253 = vmax.f32 %v235, 0.0
  %v254 = vld [vmem:[%s2] sm:$0xff]
  %v255 = vld [vmem:[%s2 + $0x8] sm:$0xff]
  %v256 = vld [vmem:[%s2 + $0x10] sm:$0xff]
  %v257 = vld [vmem:[%s2 + $0x18] sm:$0xff]
  %vm258 = vcmask 261120
  %v260 = vsel %vm258, %v238, 0
  %v263 = vsel %vm258, %v239, 0
  %v266 = vsel %vm258, %v240, 0
  %v269 = vsel %vm258, %v241, 0
  %v272 = vsel %vm258, %v242, 0
  %v275 = vsel %vm258, %v243, 0
  %v278 = vsel %vm258, %v244, 0
  %v281 = vsel %vm258, %v245, 0
  %v284 = vsel %vm258, %v246, 0
  %v287 = vsel %vm258, %v247, 0
  %v290 = vsel %vm258, %v248, 0
  %v293 = vsel %vm258, %v249, 0
  %v296 = vsel %vm258, %v250, 0
  %v299 = vsel %vm258, %v251, 0
  %v302 = vsel %vm258, %v252, 0
  %v305 = vsel %vm258, %v253, 0
  %307 = vmatprep.subr.mxu0 0.0
  %308 = vmatpush1.msra.mxu0 %v254
  %309 = vmatprep.subr.mxu0 0.0
  %310 = vmatpush1.msra.mxu0 %v255
  %311 = vmatprep.subr.mxu0 0.0
  %312 = vmatpush1.msra.mxu0 %v256
  %313 = vmatprep.subr.mxu0 0.0
  %314 = vmatpush1.msra.mxu0 %v257
  %315 = vmatprep.subr.mxu0 0.0
  %316 = vmatpush1.msra.mxu0 0.0
  %317 = vmatprep.subr.mxu0 0.0
  %318 = vmatpush1.msra.mxu0 0.0
  %319 = vmatprep.subr.mxu0 0.0
  %320 = vmatpush1.msra.mxu0 0.0
  %321 = vmatprep.subr.mxu0 0.0
  %322 = vmatpush1.msra.mxu0 0.0
  %323 = vmatprep.subr.mxu0 0.0
  %324 = vmatpush1.msra.mxu0 0.0
  %325 = vmatprep.subr.mxu0 0.0
  %326 = vmatpush1.msra.mxu0 0.0
  %327 = vmatprep.subr.mxu0 0.0
  %328 = vmatpush1.msra.mxu0 0.0
  %329 = vmatprep.subr.mxu0 0.0
  %330 = vmatpush1.msra.mxu0 0.0
  %331 = vmatprep.subr.mxu0 0.0
  %332 = vmatpush1.msra.mxu0 0.0
  %333 = vmatprep.subr.mxu0 0.0
  %334 = vmatpush1.msra.mxu0 0.0
  %335 = vmatprep.subr.mxu0 0.0
  %336 = vmatpush1.msra.mxu0 0.0
  %337 = vmatprep.subr.mxu0 0.0
  %338 = vmatpush1.msra.mxu0 0.0
  %339 = vmatprep.subr.mxu0 0.0
  %340 = vmatpush1.msra.mxu0 0.0
  %341 = vmatprep.subr.mxu0 0.0
  %342 = vmatpush1.msra.mxu0 0.0
  %343 = vmatprep.subr.mxu0 0.0
  %344 = vmatpush1.msra.mxu0 0.0
  %345 = vmatprep.subr.mxu0 0.0
  %346 = vmatpush1.msra.mxu0 0.0
  %347 = vmatprep.subr.mxu0 0.0
  %348 = vmatpush1.msra.mxu0 0.0
  %349 = vmatprep.subr.mxu0 0.0
  %350 = vmatpush1.msra.mxu0 0.0
  %351 = vmatprep.subr.mxu0 0.0
  %352 = vmatpush1.msra.mxu0 0.0
  %353 = vmatprep.subr.mxu0 0.0
  %354 = vmatpush1.msra.mxu0 0.0
  %355 = vmatprep.subr.mxu0 0.0
  %356 = vmatpush1.msra.mxu0 0.0
  %357 = vmatprep.subr.mxu0 0.0
  %358 = vmatpush1.msra.mxu0 0.0
  %359 = vmatprep.subr.mxu0 0.0
  %360 = vmatpush1.msra.mxu0 0.0
  %361 = vmatprep.subr.mxu0 0.0
  %362 = vmatpush1.msra.mxu0 0.0
  %363 = vmatprep.subr.mxu0 0.0
  %364 = vmatpush1.msra.mxu0 0.0
  %365 = vmatprep.subr.mxu0 0.0
  %366 = vmatpush1.msra.mxu0 0.0
  %367 = vmatprep.subr.mxu0 0.0
  %368 = vmatpush1.msra.mxu0 0.0
  %369 = vmatprep.subr.mxu0 0.0
  %370 = vmatpush1.msra.mxu0 0.0
  %371 = vmatprep.mubr.f32.mxu0 0.0
  %372 = vmatmul.mubr.f32.gmra.mrb[0].mxu0 %v260
  %v373 = vpop.f32.mrb[0].mxu0
  %v374 = vadd.f32 %v238, %v373
  %v375 = vpop.f32.mrb[0].mxu0
  %376 = vmatprep.mubr.f32.mxu0 0.0
  %377 = vmatmul.mubr.f32.gmra.mrb[0].mxu0 %v263
  %v378 = vpop.f32.mrb[0].mxu0
  %v379 = vadd.f32 %v239, %v378
  %v380 = vpop.f32.mrb[0].mxu0
  %381 = vmatprep.mubr.f32.mxu0 0.0
  %382 = vmatmul.mubr.f32.gmra.mrb[0].mxu0 %v266
  %v383 = vpop.f32.mrb[0].mxu0
  %v384 = vadd.f32 %v240, %v383
  %v385 = vpop.f32.mrb[0].mxu0
  %386 = vmatprep.mubr.f32.mxu0 0.0
  %387 = vmatmul.mubr.f32.gmra.mrb[0].mxu0 %v269
  %v388 = vpop.f32.mrb[0].mxu0
  %v389 = vadd.f32 %v241, %v388
  %v390 = vpop.f32.mrb[0].mxu0
  %391 = vmatprep.mubr.f32.mxu0 0.0
  %392 = vmatmul.mubr.f32.gmra.mrb[0].mxu0 %v272
  %v393 = vpop.f32.mrb[0].mxu0
  %v394 = vadd.f32 %v242, %v393
  %v395 = vpop.f32.mrb[0].mxu0
  %396 = vmatprep.mubr.f32.mxu0 0.0
  %397 = vmatmul.mubr.f32.gmra.mrb[0].mxu0 %v275
  %v398 = vpop.f32.mrb[0].mxu0
  %v399 = vadd.f32 %v243, %v398
  %v400 = vpop.f32.mrb[0].mxu0
  %401 = vmatprep.mubr.f32.mxu0 0.0
  %402 = vmatmul.mubr.f32.gmra.mrb[0].mxu0 %v278
  %v403 = vpop.f32.mrb[0].mxu0
  %v404 = vadd.f32 %v244, %v403
  %v405 = vpop.f32.mrb[0].mxu0
  %406 = vmatprep.mubr.f32.mxu0 0.0
  %407 = vmatmul.mubr.f32.gmra.mrb[0].mxu0 %v281
  %v408 = vpop.f32.mrb[0].mxu0
  %v409 = vadd.f32 %v245, %v408
  %v410 = vpop.f32.mrb[0].mxu0
  %411 = vmatprep.mubr.f32.mxu0 0.0
  %412 = vmatmul.mubr.f32.gmra.mrb[0].mxu0 %v284
  %v413 = vpop.f32.mrb[0].mxu0
  %v414 = vadd.f32 %v246, %v413
  %v415 = vpop.f32.mrb[0].mxu0
  %416 = vmatprep.mubr.f32.mxu0 0.0
  %417 = vmatmul.mubr.f32.gmra.mrb[0].mxu0 %v287
  %v418 = vpop.f32.mrb[0].mxu0
  %v419 = vadd.f32 %v247, %v418
  %v420 = vpop.f32.mrb[0].mxu0
  %421 = vmatprep.mubr.f32.mxu0 0.0
  %422 = vmatmul.mubr.f32.gmra.mrb[0].mxu0 %v290
  %v423 = vpop.f32.mrb[0].mxu0
  %v424 = vadd.f32 %v248, %v423
  %v425 = vpop.f32.mrb[0].mxu0
  %426 = vmatprep.mubr.f32.mxu0 0.0
  %427 = vmatmul.mubr.f32.gmra.mrb[0].mxu0 %v293
  %v428 = vpop.f32.mrb[0].mxu0
  %v429 = vadd.f32 %v249, %v428
  %v430 = vpop.f32.mrb[0].mxu0
  %431 = vmatprep.mubr.f32.mxu0 0.0
  %432 = vmatmul.mubr.f32.gmra.mrb[0].mxu0 %v296
  %v433 = vpop.f32.mrb[0].mxu0
  %v434 = vadd.f32 %v250, %v433
  %v435 = vpop.f32.mrb[0].mxu0
  %436 = vmatprep.mubr.f32.mxu0 0.0
  %437 = vmatmul.mubr.f32.gmra.mrb[0].mxu0 %v299
  %v438 = vpop.f32.mrb[0].mxu0
  %v439 = vadd.f32 %v251, %v438
  %v440 = vpop.f32.mrb[0].mxu0
  %441 = vmatprep.mubr.f32.mxu0 0.0
  %442 = vmatmul.mubr.f32.gmra.mrb[0].mxu0 %v302
  %v443 = vpop.f32.mrb[0].mxu0
  %v444 = vadd.f32 %v252, %v443
  %v445 = vpop.f32.mrb[0].mxu0
  %446 = vmatprep.mubr.f32.mxu0 0.0
  %447 = vmatmul.mubr.f32.gmra.mrb[0].mxu0 %v305
  %v448 = vpop.f32.mrb[0].mxu0
  %v449 = vadd.f32 %v253, %v448
  %v450 = vpop.f32.mrb[0].mxu0
  %451 = vdwg.mxu0
  %v452 = vmax.f32 %v374, 0.0
  %v453 = vmax.f32 %v379, 0.0
  %v454 = vmax.f32 %v384, 0.0
  %v455 = vmax.f32 %v389, 0.0
  %v456 = vmax.f32 %v394, 0.0
  %v457 = vmax.f32 %v399, 0.0
  %v458 = vmax.f32 %v404, 0.0
  %v459 = vmax.f32 %v409, 0.0
  %v460 = vmax.f32 %v414, 0.0
  %v461 = vmax.f32 %v419, 0.0
  %v462 = vmax.f32 %v424, 0.0
  %v463 = vmax.f32 %v429, 0.0
  %v464 = vmax.f32 %v434, 0.0
  %v465 = vmax.f32 %v439, 0.0
  %v466 = vmax.f32 %v444, 0.0
  %v467 = vmax.f32 %v449, 0.0
  %v468 = vld [vmem:[%s3] sm:$0xff]
  %v469 = vld [vmem:[%s3 + $0x8] sm:$0xff]
  %v470 = vld [vmem:[%s3 + $0x10] sm:$0xff]
  %v471 = vld [vmem:[%s3 + $0x18] sm:$0xff]
  %v473 = vsel %vm258, %v452, 0
  %v476 = vsel %vm258, %v453, 0
  %v479 = vsel %vm258, %v454, 0
  %v482 = vsel %vm258, %v455, 0
  %v485 = vsel %vm258, %v456, 0
  %v488 = vsel %vm258, %v457, 0
  %v491 = vsel %vm258, %v458, 0
  %v494 = vsel %vm258, %v459, 0
  %v497 = vsel %vm258, %v460, 0
  %v500 = vsel %vm258, %v461, 0
  %v503 = vsel %vm258, %v462, 0
  %v506 = vsel %vm258, %v463, 0
  %v509 = vsel %vm258, %v464, 0
  %v512 = vsel %vm258, %v465, 0
  %v515 = vsel %vm258, %v466, 0
  %v518 = vsel %vm258, %v467, 0
  %520 = vmatprep.subr.mxu0 0.0
  %521 = vmatpush1.msra.mxu0 %v468
  %522 = vmatprep.subr.mxu0 0.0
  %523 = vmatpush1.msra.mxu0 %v469
  %524 = vmatprep.subr.mxu0 0.0
  %525 = vmatpush1.msra.mxu0 %v470
  %526 = vmatprep.subr.mxu0 0.0
  %527 = vmatpush1.msra.mxu0 %v471
  %528 = vmatprep.subr.mxu0 0.0
  %529 = vmatpush1.msra.mxu0 0.0
  %530 = vmatprep.subr.mxu0 0.0
  %531 = vmatpush1.msra.mxu0 0.0
  %532 = vmatprep.subr.mxu0 0.0
  %533 = vmatpush1.msra.mxu0 0.0
  %534 = vmatprep.subr.mxu0 0.0
  %535 = vmatpush1.msra.mxu0 0.0
  %536 = vmatprep.subr.mxu0 0.0
  %537 = vmatpush1.msra.mxu0 0.0
  %538 = vmatprep.subr.mxu0 0.0
  %539 = vmatpush1.msra.mxu0 0.0
  %540 = vmatprep.subr.mxu0 0.0
  %541 = vmatpush1.msra.mxu0 0.0
  %542 = vmatprep.subr.mxu0 0.0
  %543 = vmatpush1.msra.mxu0 0.0
  %544 = vmatprep.subr.mxu0 0.0
  %545 = vmatpush1.msra.mxu0 0.0
  %546 = vmatprep.subr.mxu0 0.0
  %547 = vmatpush1.msra.mxu0 0.0
  %548 = vmatprep.subr.mxu0 0.0
  %549 = vmatpush1.msra.mxu0 0.0
  %550 = vmatprep.subr.mxu0 0.0
  %551 = vmatpush1.msra.mxu0 0.0
  %552 = vmatprep.subr.mxu0 0.0
  %553 = vmatpush1.msra.mxu0 0.0
  %554 = vmatprep.subr.mxu0 0.0
  %555 = vmatpush1.msra.mxu0 0.0
  %556 = vmatprep.subr.mxu0 0.0
  %557 = vmatpush1.msra.mxu0 0.0
  %558 = vmatprep.subr.mxu0 0.0
  %559 = vmatpush1.msra.mxu0 0.0
  %560 = vmatprep.subr.mxu0 0.0
  %561 = vmatpush1.msra.mxu0 0.0
  %562 = vmatprep.subr.mxu0 0.0
  %563 = vmatpush1.msra.mxu0 0.0
  %564 = vmatprep.subr.mxu0 0.0
  %565 = vmatpush1.msra.mxu0 0.0
  %566 = vmatprep.subr.mxu0 0.0
  %567 = vmatpush1.msra.mxu0 0.0
  %568 = vmatprep.subr.mxu0 0.0
  %569 = vmatpush1.msra.mxu0 0.0
  %570 = vmatprep.subr.mxu0 0.0
  %571 = vmatpush1.msra.mxu0 0.0
  %572 = vmatprep.subr.mxu0 0.0
  %573 = vmatpush1.msra.mxu0 0.0
  %574 = vmatprep.subr.mxu0 0.0
  %575 = vmatpush1.msra.mxu0 0.0
  %576 = vmatprep.subr.mxu0 0.0
  %577 = vmatpush1.msra.mxu0 0.0
  %578 = vmatprep.subr.mxu0 0.0
  %579 = vmatpush1.msra.mxu0 0.0
  %580 = vmatprep.subr.mxu0 0.0
  %581 = vmatpush1.msra.mxu0 0.0
  %582 = vmatprep.subr.mxu0 0.0
  %583 = vmatpush1.msra.mxu0 0.0
  %584 = vmatprep.mubr.f32.mxu0 0.0
  %585 = vmatmul.mubr.f32.gmra.mrb[0].mxu0 %v473
  %v586 = vpop.f32.mrb[0].mxu0
  %v587 = vadd.f32 %v452, %v586
  %v588 = vpop.f32.mrb[0].mxu0
  %589 = vmatprep.mubr.f32.mxu0 0.0
  %590 = vmatmul.mubr.f32.gmra.mrb[0].mxu0 %v476
  %v591 = vpop.f32.mrb[0].mxu0
  %v592 = vadd.f32 %v453, %v591
  %v593 = vpop.f32.mrb[0].mxu0
  %594 = vmatprep.mubr.f32.mxu0 0.0
  %595 = vmatmul.mubr.f32.gmra.mrb[0].mxu0 %v479
  %v596 = vpop.f32.mrb[0].mxu0
  %v597 = vadd.f32 %v454, %v596
  %v598 = vpop.f32.mrb[0].mxu0
  %599 = vmatprep.mubr.f32.mxu0 0.0
  %600 = vmatmul.mubr.f32.gmra.mrb[0].mxu0 %v482
  %v601 = vpop.f32.mrb[0].mxu0
  %v602 = vadd.f32 %v455, %v601
  %v603 = vpop.f32.mrb[0].mxu0
  %604 = vmatprep.mubr.f32.mxu0 0.0
  %605 = vmatmul.mubr.f32.gmra.mrb[0].mxu0 %v485
  %v606 = vpop.f32.mrb[0].mxu0
  %v607 = vadd.f32 %v456, %v606
  %v608 = vpop.f32.mrb[0].mxu0
  %609 = vmatprep.mubr.f32.mxu0 0.0
  %610 = vmatmul.mubr.f32.gmra.mrb[0].mxu0 %v488
  %v611 = vpop.f32.mrb[0].mxu0
  %v612 = vadd.f32 %v457, %v611
  %v613 = vpop.f32.mrb[0].mxu0
  %614 = vmatprep.mubr.f32.mxu0 0.0
  %615 = vmatmul.mubr.f32.gmra.mrb[0].mxu0 %v491
  %v616 = vpop.f32.mrb[0].mxu0
  %v617 = vadd.f32 %v458, %v616
  %v618 = vpop.f32.mrb[0].mxu0
  %619 = vmatprep.mubr.f32.mxu0 0.0
  %620 = vmatmul.mubr.f32.gmra.mrb[0].mxu0 %v494
  %v621 = vpop.f32.mrb[0].mxu0
  %v622 = vadd.f32 %v459, %v621
  %v623 = vpop.f32.mrb[0].mxu0
  %624 = vmatprep.mubr.f32.mxu0 0.0
  %625 = vmatmul.mubr.f32.gmra.mrb[0].mxu0 %v497
  %v626 = vpop.f32.mrb[0].mxu0
  %v627 = vadd.f32 %v460, %v626
  %v628 = vpop.f32.mrb[0].mxu0
  %629 = vmatprep.mubr.f32.mxu0 0.0
  %630 = vmatmul.mubr.f32.gmra.mrb[0].mxu0 %v500
  %v631 = vpop.f32.mrb[0].mxu0
  %v632 = vadd.f32 %v461, %v631
  %v633 = vpop.f32.mrb[0].mxu0
  %634 = vmatprep.mubr.f32.mxu0 0.0
  %635 = vmatmul.mubr.f32.gmra.mrb[0].mxu0 %v503
  %v636 = vpop.f32.mrb[0].mxu0
  %v637 = vadd.f32 %v462, %v636
  %v638 = vpop.f32.mrb[0].mxu0
  %639 = vmatprep.mubr.f32.mxu0 0.0
  %640 = vmatmul.mubr.f32.gmra.mrb[0].mxu0 %v506
  %v641 = vpop.f32.mrb[0].mxu0
  %v642 = vadd.f32 %v463, %v641
  %v643 = vpop.f32.mrb[0].mxu0
  %644 = vmatprep.mubr.f32.mxu0 0.0
  %645 = vmatmul.mubr.f32.gmra.mrb[0].mxu0 %v509
  %v646 = vpop.f32.mrb[0].mxu0
  %v647 = vadd.f32 %v464, %v646
  %v648 = vpop.f32.mrb[0].mxu0
  %649 = vmatprep.mubr.f32.mxu0 0.0
  %650 = vmatmul.mubr.f32.gmra.mrb[0].mxu0 %v512
  %v651 = vpop.f32.mrb[0].mxu0
  %v652 = vadd.f32 %v465, %v651
  %v653 = vpop.f32.mrb[0].mxu0
  %654 = vmatprep.mubr.f32.mxu0 0.0
  %655 = vmatmul.mubr.f32.gmra.mrb[0].mxu0 %v515
  %v656 = vpop.f32.mrb[0].mxu0
  %v657 = vadd.f32 %v466, %v656
  %v658 = vpop.f32.mrb[0].mxu0
  %659 = vmatprep.mubr.f32.mxu0 0.0
  %660 = vmatmul.mubr.f32.gmra.mrb[0].mxu0 %v518
  %v661 = vpop.f32.mrb[0].mxu0
  %v662 = vadd.f32 %v467, %v661
  %v663 = vpop.f32.mrb[0].mxu0
  %664 = vdwg.mxu0
  %v665 = vmax.f32 %v587, 0.0
  %v666 = vmax.f32 %v592, 0.0
  %v667 = vmax.f32 %v597, 0.0
  %v668 = vmax.f32 %v602, 0.0
  %v669 = vmax.f32 %v607, 0.0
  %v670 = vmax.f32 %v612, 0.0
  %v671 = vmax.f32 %v617, 0.0
  %v672 = vmax.f32 %v622, 0.0
  %v673 = vmax.f32 %v627, 0.0
  %v674 = vmax.f32 %v632, 0.0
  %v675 = vmax.f32 %v637, 0.0
  %v676 = vmax.f32 %v642, 0.0
  %v677 = vmax.f32 %v647, 0.0
  %v678 = vmax.f32 %v652, 0.0
  %v679 = vmax.f32 %v657, 0.0
  %v680 = vmax.f32 %v662, 0.0
  %v681 = vld [vmem:[%s4] sm:$0xff]
  %v682 = vld [vmem:[%s4 + $0x8] sm:$0xff]
  %v683 = vld [vmem:[%s4 + $0x10] sm:$0xff]
  %v684 = vld [vmem:[%s4 + $0x18] sm:$0xff]
  %v686 = vsel %vm258, %v665, 0
  %v689 = vsel %vm258, %v666, 0
  %v692 = vsel %vm258, %v667, 0
  %v695 = vsel %vm258, %v668, 0
  %v698 = vsel %vm258, %v669, 0
  %v701 = vsel %vm258, %v670, 0
  %v704 = vsel %vm258, %v671, 0
  %v707 = vsel %vm258, %v672, 0
  %v710 = vsel %vm258, %v673, 0
  %v713 = vsel %vm258, %v674, 0
  %v716 = vsel %vm258, %v675, 0
  %v719 = vsel %vm258, %v676, 0
  %v722 = vsel %vm258, %v677, 0
  %v725 = vsel %vm258, %v678, 0
  %v728 = vsel %vm258, %v679, 0
  %v731 = vsel %vm258, %v680, 0
  %733 = vmatprep.subr.mxu0 0.0
  %734 = vmatpush1.msra.mxu0 %v681
  %735 = vmatprep.subr.mxu0 0.0
  %736 = vmatpush1.msra.mxu0 %v682
  %737 = vmatprep.subr.mxu0 0.0
  %738 = vmatpush1.msra.mxu0 %v683
  %739 = vmatprep.subr.mxu0 0.0
  %740 = vmatpush1.msra.mxu0 %v684
  %741 = vmatprep.subr.mxu0 0.0
  %742 = vmatpush1.msra.mxu0 0.0
  %743 = vmatprep.subr.mxu0 0.0
  %744 = vmatpush1.msra.mxu0 0.0
  %745 = vmatprep.subr.mxu0 0.0
  %746 = vmatpush1.msra.mxu0 0.0
  %747 = vmatprep.subr.mxu0 0.0
  %748 = vmatpush1.msra.mxu0 0.0
  %749 = vmatprep.subr.mxu0 0.0
  %750 = vmatpush1.msra.mxu0 0.0
  %751 = vmatprep.subr.mxu0 0.0
  %752 = vmatpush1.msra.mxu0 0.0
  %753 = vmatprep.subr.mxu0 0.0
  %754 = vmatpush1.msra.mxu0 0.0
  %755 = vmatprep.subr.mxu0 0.0
  %756 = vmatpush1.msra.mxu0 0.0
  %757 = vmatprep.subr.mxu0 0.0
  %758 = vmatpush1.msra.mxu0 0.0
  %759 = vmatprep.subr.mxu0 0.0
  %760 = vmatpush1.msra.mxu0 0.0
  %761 = vmatprep.subr.mxu0 0.0
  %762 = vmatpush1.msra.mxu0 0.0
  %763 = vmatprep.subr.mxu0 0.0
  %764 = vmatpush1.msra.mxu0 0.0
  %765 = vmatprep.subr.mxu0 0.0
  %766 = vmatpush1.msra.mxu0 0.0
  %767 = vmatprep.subr.mxu0 0.0
  %768 = vmatpush1.msra.mxu0 0.0
  %769 = vmatprep.subr.mxu0 0.0
  %770 = vmatpush1.msra.mxu0 0.0
  %771 = vmatprep.subr.mxu0 0.0
  %772 = vmatpush1.msra.mxu0 0.0
  %773 = vmatprep.subr.mxu0 0.0
  %774 = vmatpush1.msra.mxu0 0.0
  %775 = vmatprep.subr.mxu0 0.0
  %776 = vmatpush1.msra.mxu0 0.0
  %777 = vmatprep.subr.mxu0 0.0
  %778 = vmatpush1.msra.mxu0 0.0
  %779 = vmatprep.subr.mxu0 0.0
  %780 = vmatpush1.msra.mxu0 0.0
  %781 = vmatprep.subr.mxu0 0.0
  %782 = vmatpush1.msra.mxu0 0.0
  %783 = vmatprep.subr.mxu0 0.0
  %784 = vmatpush1.msra.mxu0 0.0
  %785 = vmatprep.subr.mxu0 0.0
  %786 = vmatpush1.msra.mxu0 0.0
  %787 = vmatprep.subr.mxu0 0.0
  %788 = vmatpush1.msra.mxu0 0.0
  %789 = vmatprep.subr.mxu0 0.0
  %790 = vmatpush1.msra.mxu0 0.0
  %791 = vmatprep.subr.mxu0 0.0
  %792 = vmatpush1.msra.mxu0 0.0
  %793 = vmatprep.subr.mxu0 0.0
  %794 = vmatpush1.msra.mxu0 0.0
  %795 = vmatprep.subr.mxu0 0.0
  %796 = vmatpush1.msra.mxu0 0.0
  %797 = vmatprep.mubr.f32.mxu0 0.0
  %798 = vmatmul.mubr.f32.gmra.mrb[0].mxu0 %v686
  %v799 = vpop.f32.mrb[0].mxu0
  %v800 = vadd.f32 0.0, %v799
  %v801 = vpop.f32.mrb[0].mxu0
  %802 = vmatprep.mubr.f32.mxu0 0.0
  %803 = vmatmul.mubr.f32.gmra.mrb[0].mxu0 %v689
  %v804 = vpop.f32.mrb[0].mxu0
  %v805 = vadd.f32 0.0, %v804
  %v806 = vpop.f32.mrb[0].mxu0
  %807 = vmatprep.mubr.f32.mxu0 0.0
  %808 = vmatmul.mubr.f32.gmra.mrb[0].mxu0 %v692
  %v809 = vpop.f32.mrb[0].mxu0
  %v810 = vadd.f32 0.0, %v809
  %v811 = vpop.f32.mrb[0].mxu0
  %812 = vmatprep.mubr.f32.mxu0 0.0
  %813 = vmatmul.mubr.f32.gmra.mrb[0].mxu0 %v695
  %v814 = vpop.f32.mrb[0].mxu0
  %v815 = vadd.f32 0.0, %v814
  %v816 = vpop.f32.mrb[0].mxu0
  %817 = vmatprep.mubr.f32.mxu0 0.0
  %818 = vmatmul.mubr.f32.gmra.mrb[0].mxu0 %v698
  %v819 = vpop.f32.mrb[0].mxu0
  %v820 = vadd.f32 0.0, %v819
  %v821 = vpop.f32.mrb[0].mxu0
  %822 = vmatprep.mubr.f32.mxu0 0.0
  %823 = vmatmul.mubr.f32.gmra.mrb[0].mxu0 %v701
  %v824 = vpop.f32.mrb[0].mxu0
  %v825 = vadd.f32 0.0, %v824
  %v826 = vpop.f32.mrb[0].mxu0
  %827 = vmatprep.mubr.f32.mxu0 0.0
  %828 = vmatmul.mubr.f32.gmra.mrb[0].mxu0 %v704
  %v829 = vpop.f32.mrb[0].mxu0
  %v830 = vadd.f32 0.0, %v829
  %v831 = vpop.f32.mrb[0].mxu0
  %832 = vmatprep.mubr.f32.mxu0 0.0
  %833 = vmatmul.mubr.f32.gmra.mrb[0].mxu0 %v707
  %v834 = vpop.f32.mrb[0].mxu0
  %v835 = vadd.f32 0.0, %v834
  %v836 = vpop.f32.mrb[0].mxu0
  %837 = vmatprep.mubr.f32.mxu0 0.0
  %838 = vmatmul.mubr.f32.gmra.mrb[0].mxu0 %v710
  %v839 = vpop.f32.mrb[0].mxu0
  %v840 = vadd.f32 0.0, %v839
  %v841 = vpop.f32.mrb[0].mxu0
  %842 = vmatprep.mubr.f32.mxu0 0.0
  %843 = vmatmul.mubr.f32.gmra.mrb[0].mxu0 %v713
  %v844 = vpop.f32.mrb[0].mxu0
  %v845 = vadd.f32 0.0, %v844
  %v846 = vpop.f32.mrb[0].mxu0
  %847 = vmatprep.mubr.f32.mxu0 0.0
  %848 = vmatmul.mubr.f32.gmra.mrb[0].mxu0 %v716
  %v849 = vpop.f32.mrb[0].mxu0
  %v850 = vadd.f32 0.0, %v849
  %v851 = vpop.f32.mrb[0].mxu0
  %852 = vmatprep.mubr.f32.mxu0 0.0
  %853 = vmatmul.mubr.f32.gmra.mrb[0].mxu0 %v719
  %v854 = vpop.f32.mrb[0].mxu0
  %v855 = vadd.f32 0.0, %v854
  %v856 = vpop.f32.mrb[0].mxu0
  %857 = vmatprep.mubr.f32.mxu0 0.0
  %858 = vmatmul.mubr.f32.gmra.mrb[0].mxu0 %v722
  %v859 = vpop.f32.mrb[0].mxu0
  %v860 = vadd.f32 0.0, %v859
  %v861 = vpop.f32.mrb[0].mxu0
  %862 = vmatprep.mubr.f32.mxu0 0.0
  %863 = vmatmul.mubr.f32.gmra.mrb[0].mxu0 %v725
  %v864 = vpop.f32.mrb[0].mxu0
  %v865 = vadd.f32 0.0, %v864
  %v866 = vpop.f32.mrb[0].mxu0
  %867 = vmatprep.mubr.f32.mxu0 0.0
  %868 = vmatmul.mubr.f32.gmra.mrb[0].mxu0 %v728
  %v869 = vpop.f32.mrb[0].mxu0
  %v870 = vadd.f32 0.0, %v869
  %v871 = vpop.f32.mrb[0].mxu0
  %872 = vmatprep.mubr.f32.mxu0 0.0
  %873 = vmatmul.mubr.f32.gmra.mrb[0].mxu0 %v731
  %v874 = vpop.f32.mrb[0].mxu0
  %v875 = vadd.f32 0.0, %v874
  %v876 = vpop.f32.mrb[0].mxu0
  %877 = vdwg.mxu0
  %vm878 = vcmask 64512
  %879 = vst.msk [vmem:[%s5] sm:$0xff] %vm878, %v800
  %880 = vst.msk [vmem:[%s5 + $0x8] sm:$0xff] %vm878, %v805
  %881 = vst.msk [vmem:[%s5 + $0x10] sm:$0xff] %vm878, %v810
  %882 = vst.msk [vmem:[%s5 + $0x18] sm:$0xff] %vm878, %v815
  %883 = vst.msk [vmem:[%s5 + $0x20] sm:$0xff] %vm878, %v820
  %884 = vst.msk [vmem:[%s5 + $0x28] sm:$0xff] %vm878, %v825
  %885 = vst.msk [vmem:[%s5 + $0x30] sm:$0xff] %vm878, %v830
  %886 = vst.msk [vmem:[%s5 + $0x38] sm:$0xff] %vm878, %v835
  %887 = vst.msk [vmem:[%s5 + $0x40] sm:$0xff] %vm878, %v840
  %888 = vst.msk [vmem:[%s5 + $0x48] sm:$0xff] %vm878, %v845
  %889 = vst.msk [vmem:[%s5 + $0x50] sm:$0xff] %vm878, %v850
  %890 = vst.msk [vmem:[%s5 + $0x58] sm:$0xff] %vm878, %v855
  %891 = vst.msk [vmem:[%s5 + $0x60] sm:$0xff] %vm878, %v860
  %892 = vst.msk [vmem:[%s5 + $0x68] sm:$0xff] %vm878, %v865
  %893 = vst.msk [vmem:[%s5 + $0x70] sm:$0xff] %vm878, %v870
  %894 = vst.msk [vmem:[%s5 + $0x78] sm:$0xff] %vm878, %v875
  // Predicated region
  $region22: #{tpu_custom_call.1} parent=0 // pred_check
    _
  $region23: #{tpu_custom_call.1} parent=0 // pred_check_branch
    %896 = sbr.rel (0) target = $region25
  $region24: #{tpu_custom_call.1} parent=0 // pred_region
    _
  $region25: #{tpu_custom_call.1} parent=0 // pred_fallthru
    _
  // Predicated region
  $region26: #{tpu_custom_call.1} parent=0 // pred_check
    _
  $region27: #{tpu_custom_call.1} parent=0 // pred_check_branch
    %898 = sbr.rel (0) target = $region29
  $region28: #{tpu_custom_call.1} parent=0 // pred_region
    _
  $region29: #{tpu_custom_call.1} parent=0 // pred_fallthru
    _

</llo_original>
